<compile_context>
chip_gen: v6e
topology: v6e:2x2x1
jax: 0.10.0
libtpu: 0.0.40
codegen_flags: <defaults>
</compile_context>

<pallas_src>
import jax
import jax.numpy as jnp
from jax.experimental import pallas as pl
from jax.experimental.pallas import tpu as pltpu


N_FACTORS = 25
HIDDEN = 128
MIN_RATING, MAX_RATING = 1.0, 5.0


def _round_up(x, m):
    return ((x + m - 1) // m) * m


def _vmem_limit_bytes(tile_b, nu_pad, nm_pad, nf_pad):
    # Resident weights / tables (constant index_map); budget 2x for the
    # pipeline's default double-buffering.
    resident = 2 * (
        nf_pad * (nu_pad + nm_pad) * 2          # embedding tables^T (bf16)
        + 2 * HIDDEN * nf_pad * 2               # w1u, w1m (bf16)
        + HIDDEN * HIDDEN * 2                   # w2 (bf16)
        + HIDDEN * (2 + 4 + 2)                  # b1 bf16, b2 f32, w3 bf16
    )
    # Streamed per-step tiles (double-buffered): two int32 index rows + f32 out.
    streams = 2 * tile_b * (2 * 4 + 4)
    # In-flight activations: one-hots, gathered features, h1/h2, logits.
    acts = tile_b * (
        (nu_pad + nm_pad) * (4 + 2)             # one-hot (f32 select + bf16)
        + 2 * nf_pad * (4 + 2)                  # xu/xm f32 accum + bf16
        + HIDDEN * (4 + 2)                      # h1 f32 accum + bf16
        + HIDDEN * 4                            # h2 f32
        + 4 * 4                                 # logits / output rows
    )
    need = resident + streams + acts
    return int(min(max(2 * need, 8 << 20), 48 << 20))


def _fused_kernel(uidx_ref, midx_ref, u_tab_ref, m_tab_ref,
                  w1u_ref, w1m_ref, b1_ref, w2_ref, b2_ref, w3_ref, b3_ref,
                  o_ref):
    """Fused gather + MLP in transposed (batch-on-lanes) layout.

    uidx/midx : [1, TILE_B]        int32   user / movie ids for this tile
    u_tab/m_tab:[NF_PAD, N*_PAD]   bf16    transposed embedding tables (resident)
    w1u/w1m   : [H, NF_PAD]        bf16    first Linear, split user/movie halves
    b1        : [H, 1]             bf16
    w2        : [H, H]             bf16
    b2        : [H, 1]             f32
    w3        : [H, 1]             bf16
    b3        : [1, 1]             f32     SMEM scalar
    o_ref     : [1, 1, TILE_B]     f32     lane-dense output tile
    """
    uidx = uidx_ref[...]                                   # [1, TB] int32
    midx = midx_ref[...]

    nu = u_tab_ref.shape[1]
    nm = m_tab_ref.shape[1]
    tb = uidx.shape[1]

    # In-kernel embedding gather as a one-hot MXU matmul (exact: each output
    # column is one table column times 1.0, accumulated in f32).
    u_iota = jax.lax.broadcasted_iota(jnp.int32, (nu, tb), 0)
    m_iota = jax.lax.broadcasted_iota(jnp.int32, (nm, tb), 0)
    onehot_u = jnp.where(u_iota == uidx, 1.0, 0.0).astype(jnp.bfloat16)  # [NU, TB]
    onehot_m = jnp.where(m_iota == midx, 1.0, 0.0).astype(jnp.bfloat16)  # [NM, TB]

    xu = jnp.dot(u_tab_ref[...], onehot_u,
                 preferred_element_type=jnp.float32).astype(jnp.bfloat16)  # [NF_PAD, TB]
    xm = jnp.dot(m_tab_ref[...], onehot_m,
                 preferred_element_type=jnp.float32).astype(jnp.bfloat16)  # [NF_PAD, TB]

    # Layer 1: W1 @ [xu; xm] without the concat (split weight halves), f32 MXU
    # accumulation, bf16 epilogue (bias + ReLU) -> bf16 VALU on v6e/v7x.
    h1 = jnp.dot(w1u_ref[...], xu, preferred_element_type=jnp.float32)
    h1 = h1 + jnp.dot(w1m_ref[...], xm, preferred_element_type=jnp.float32)
    h1 = jnp.maximum(h1.astype(jnp.bfloat16) + b1_ref[...], 0.0)        # bf16 [H, TB]

    # Layer 2: [H, H] @ [H, TB]
    h2 = jnp.dot(w2_ref[...], h1, preferred_element_type=jnp.float32)
    h2 = jnp.maximum(h2 + b2_ref[...], 0.0)                              # f32 [H, TB]

    # Layer 3 (out_features == 1): VPU multiply + sublane (XLU) reduction,
    # avoiding a degenerate 1-wide MXU matmul; result is lane-dense [1, TB].
    w3 = w3_ref[...].astype(jnp.float32)                                 # [H, 1]
    logits = jnp.sum(h2 * w3, axis=0, keepdims=True) + b3_ref[0, 0]

    out = 1.0 / (1.0 + jnp.exp(-logits))                                 # sigmoid (EUP)
    o_ref[0] = out * (MAX_RATING - MIN_RATING) + MIN_RATING


def recommender_forward(users, movies, params, *, max_tile_b=4096):
    """users, movies: int32 [B].  Returns float32 [B, 1] predicted ratings."""
    B = users.shape[0]

    # Tile selection: as large as sensible (amortize ~0.35 us/step grid
    # overhead), but keep >= 2 tiles for big batches so v7x's two TensorCores
    # both get work via the "parallel" batch axis.
    b_ceil = _round_up(max(B, 1), 128)
    tile_b = min(max_tile_b, b_ceil)
    if b_ceil >= 256:
        tile_b = min(tile_b, max(128, (b_ceil // 2) // 128 * 128))
    b_pad = _round_up(B, tile_b)
    num_tiles = b_pad // tile_b

    # --- weight / table prep (tiny; constant-folded under jit) -------------
    u_w = params["u_weight"]                       # [n_users, nf] bf16
    m_w = params["m_weight"]                       # [n_movies, nf] bf16
    nf = u_w.shape[1]
    nu_pad = _round_up(u_w.shape[0], 16)
    nm_pad = _round_up(m_w.shape[0], 16)
    nf_pad = _round_up(nf, 32)                     # bf16 sublane-aligned K

    u_tab_t = jnp.zeros((nf_pad, nu_pad), jnp.bfloat16).at[:nf, :u_w.shape[0]].set(u_w.T)
    m_tab_t = jnp.zeros((nf_pad, nm_pad), jnp.bfloat16).at[:nf, :m_w.shape[0]].set(m_w.T)
    w1 = params["w1"]                              # [H, 2*nf] bf16
    w1u = jnp.zeros((HIDDEN, nf_pad), jnp.bfloat16).at[:, :nf].set(w1[:, :nf])
    w1m = jnp.zeros((HIDDEN, nf_pad), jnp.bfloat16).at[:, :nf].set(w1[:, nf:])

    # --- index rows (only HBM->VMEM traffic that scales with B) ------------
    users_p = jnp.zeros((b_pad,), jnp.int32).at[:B].set(users.astype(jnp.int32))
    movies_p = jnp.zeros((b_pad,), jnp.int32).at[:B].set(movies.astype(jnp.int32))
    users_p = users_p.reshape(1, b_pad)
    movies_p = movies_p.reshape(1, b_pad)

    const = lambda i: (0, 0)
    out_tiles = pl.pallas_call(
        _fused_kernel,
        out_shape=jax.ShapeDtypeStruct((num_tiles, 1, tile_b), jnp.float32),
        grid=(num_tiles,),
        in_specs=[
            # per-tile index rows (pipelined over the grid)
            pl.BlockSpec((1, tile_b), lambda i: (0, i)),
            pl.BlockSpec((1, tile_b), lambda i: (0, i)),
            # tables / weights / biases: constant index_map -> fetched once, resident
            pl.BlockSpec((nf_pad, nu_pad), const),
            pl.BlockSpec((nf_pad, nm_pad), const),
            pl.BlockSpec((HIDDEN, nf_pad), const),
            pl.BlockSpec((HIDDEN, nf_pad), const),
            pl.BlockSpec((HIDDEN, 1), const),
            pl.BlockSpec((HIDDEN, HIDDEN), const),
            pl.BlockSpec((HIDDEN, 1), const),
            pl.BlockSpec((HIDDEN, 1), const),
            # scalar output bias lives in SMEM
            pl.BlockSpec((1, 1), const, memory_space=pltpu.MemorySpace.SMEM),
        ],
        out_specs=pl.BlockSpec((1, 1, tile_b), lambda i: (i, 0, 0)),
        compiler_params=pltpu.CompilerParams(
            dimension_semantics=("parallel",),
            vmem_limit_bytes=_vmem_limit_bytes(tile_b, nu_pad, nm_pad, nf_pad),
        ),
    )(
        users_p, movies_p,
        u_tab_t, m_tab_t,
        w1u, w1m, params["b1"],
        params["w2"], params["b2"],
        params["w3"], params["b3"],
    )
    return out_tiles.reshape(b_pad, 1)[:B]


def _xavier_uniform(key, fan_out, fan_in):
    limit = jnp.sqrt(6.0 / (fan_in + fan_out))
    # PyTorch Linear layout [out_features, in_features]; kernel computes W @ x.
    w = jax.random.uniform(key, (fan_out, fan_in), jnp.float32, -limit, limit)
    return w.astype(jnp.bfloat16)


def init_params(key, n_users, n_movies, n_factors=N_FACTORS):
    keys = jax.random.split(key, 5)
    feat = 2 * n_factors
    return {
        "u_weight": jax.random.uniform(keys[0], (n_users, n_factors),
                                       jnp.float32, -0.05, 0.05).astype(jnp.bfloat16),
        "m_weight": jax.random.uniform(keys[1], (n_movies, n_factors),
                                       jnp.float32, -0.05, 0.05).astype(jnp.bfloat16),
        "w1": _xavier_uniform(keys[2], HIDDEN, feat),
        "b1": jnp.full((HIDDEN, 1), 0.01, jnp.bfloat16),
        "w2": _xavier_uniform(keys[3], HIDDEN, HIDDEN),
        "b2": jnp.full((HIDDEN, 1), 0.01, jnp.float32),
        "w3": _xavier_uniform(keys[4], 1, HIDDEN).reshape(HIDDEN, 1),
        "b3": jnp.full((1, 1), 0.01, jnp.float32),
    }


def _reference_forward(users, movies, params):
    """Pure-JAX reference (mirrors the kernel's bf16-storage / f32-MXU path)."""
    u = jnp.take(params["u_weight"], users, axis=0).astype(jnp.float32)
    m = jnp.take(params["m_weight"], movies, axis=0).astype(jnp.float32)
    x = jnp.concatenate([u, m], axis=1)                              # [B, 2F] f32
    w1 = params["w1"].astype(jnp.float32)
    w2 = params["w2"].astype(jnp.float32)
    w3 = params["w3"].astype(jnp.float32)
    # layer 1: f32 matmul, bf16 bias + ReLU epilogue (mirrors kernel)
    h1 = (x @ w1.T).astype(jnp.bfloat16) + params["b1"][:, 0]
    h1 = jnp.maximum(h1, 0.0).astype(jnp.float32)
    h2 = jnp.maximum(h1 @ w2.T + params["b2"][:, 0], 0.0)
    logits = h2 @ w3 + params["b3"]
    out = jax.nn.sigmoid(logits)
    return out * (MAX_RATING - MIN_RATING) + MIN_RATING


if __name__ == "__main__":
    n_users, n_movies = 50, 40

    key = jax.random.PRNGKey(0)
    k_params, k_u, k_m, k_u2, k_m2 = jax.random.split(key, 5)
    params = init_params(k_params, n_users, n_movies)

    # --- small single-tile batch -------------------------------------------
    batch = 8
    users = jax.random.randint(k_u, (batch,), 0, n_users, dtype=jnp.int32)
    movies = jax.random.randint(k_m, (batch,), 0, n_movies, dtype=jnp.int32)

    out = jax.block_until_ready(recommender_forward(users, movies, params))
    ref = _reference_forward(users, movies, params)
    assert out.shape == (batch, 1)
    assert bool(jnp.all(out >= MIN_RATING)) and bool(jnp.all(out <= MAX_RATING))
    assert jnp.allclose(out, ref, atol=5e-2, rtol=0.0), (out, ref)

    # --- multi-tile path (num_tiles > 1, parallel batch axis, output order) --
    batch2 = 300
    users2 = jax.random.randint(k_u2, (batch2,), 0, n_users, dtype=jnp.int32)
    movies2 = jax.random.randint(k_m2, (batch2,), 0, n_movies, dtype=jnp.int32)

    out2 = jax.block_until_ready(
        recommender_forward(users2, movies2, params, max_tile_b=128))
    ref2 = _reference_forward(users2, movies2, params)
    assert out2.shape == (batch2, 1)
    assert bool(jnp.all(out2 >= MIN_RATING)) and bool(jnp.all(out2 <= MAX_RATING))
    assert jnp.allclose(out2, ref2, atol=5e-2, rtol=0.0), (out2, ref2)

    print("KERNEL_OK")
</pallas_src>

<mosaic_0001>
module attributes {stable_mosaic.version = 11 : i64} {
  func.func @_fused_kernel(%arg0: i32, %arg1: memref<1x128xi32, #tpu.memory_space<vmem>>, %arg2: memref<1x128xi32, #tpu.memory_space<vmem>>, %arg3: memref<32x64xbf16, #tpu.memory_space<vmem>>, %arg4: memref<32x48xbf16, #tpu.memory_space<vmem>>, %arg5: memref<128x32xbf16, #tpu.memory_space<vmem>>, %arg6: memref<128x32xbf16, #tpu.memory_space<vmem>>, %arg7: memref<128x1xbf16, #tpu.memory_space<vmem>>, %arg8: memref<128x128xbf16, #tpu.memory_space<vmem>>, %arg9: memref<128x1xf32, #tpu.memory_space<vmem>>, %arg10: memref<128x1xbf16, #tpu.memory_space<vmem>>, %arg11: memref<1x1xf32, #tpu.memory_space<smem>>, %arg12: memref<1x1x128xf32, #tpu.memory_space<vmem>>) attributes {dimension_semantics = [#tpu.dimension_semantics<parallel>], iteration_bounds = array<i64: 1>, scalar_prefetch = 0 : i64, scratch_operands = 0 : i64, tpu.core_type = #tpu.core_type<tc>, window_params = [{transform_indices = @transform_0, window_bounds = array<i64: 1, 128>}, {transform_indices = @transform_1, window_bounds = array<i64: 1, 128>}, {pipeline_mode = #tpu.pipeline_mode<synchronous>, transform_indices = @transform_2, window_bounds = array<i64: 32, 64>}, {pipeline_mode = #tpu.pipeline_mode<synchronous>, transform_indices = @transform_3, window_bounds = array<i64: 32, 48>}, {pipeline_mode = #tpu.pipeline_mode<synchronous>, transform_indices = @transform_4, window_bounds = array<i64: 128, 32>}, {pipeline_mode = #tpu.pipeline_mode<synchronous>, transform_indices = @transform_5, window_bounds = array<i64: 128, 32>}, {pipeline_mode = #tpu.pipeline_mode<synchronous>, transform_indices = @transform_6, window_bounds = array<i64: 128, 1>}, {pipeline_mode = #tpu.pipeline_mode<synchronous>, transform_indices = @transform_7, window_bounds = array<i64: 128, 128>}, {pipeline_mode = #tpu.pipeline_mode<synchronous>, transform_indices = @transform_8, window_bounds = array<i64: 128, 1>}, {pipeline_mode = #tpu.pipeline_mode<synchronous>, transform_indices = @transform_9, window_bounds = array<i64: 128, 1>}, {transform_indices = @transform_10, window_bounds = array<i64: 1, 1>}, {transform_indices = @transform_11, window_bounds = array<i64: 1, 1, 128>}]} {
    %c0 = arith.constant 0 : index
    %c0_0 = arith.constant 0 : index
    %0 = vector.load %arg1[%c0, %c0_0] : memref<1x128xi32, #tpu.memory_space<vmem>>, vector<1x128xi32>
    %c0_1 = arith.constant 0 : index
    %c0_2 = arith.constant 0 : index
    %1 = vector.load %arg2[%c0_1, %c0_2] : memref<1x128xi32, #tpu.memory_space<vmem>>, vector<1x128xi32>
    %2 = tpu.iota {dimensions = array<i32: 0>} : vector<64x128xi32>
    %3 = tpu.iota {dimensions = array<i32: 0>} : vector<48x128xi32>
    %4 = vector.broadcast %0 : vector<1x128xi32> to vector<64x128xi32>
    %5 = arith.cmpi eq, %2, %4 : vector<64x128xi32>
    %cst = arith.constant 1.000000e+00 : f32
    %cst_3 = arith.constant 0.000000e+00 : f32
    %6 = vector.broadcast %cst : f32 to vector<64x128xf32>
    %7 = vector.broadcast %cst_3 : f32 to vector<64x128xf32>
    %8 = arith.select %5, %6, %7 : vector<64x128xi1>, vector<64x128xf32>
    %9 = arith.truncf %8 : vector<64x128xf32> to vector<64x128xbf16>
    %10 = vector.broadcast %1 : vector<1x128xi32> to vector<48x128xi32>
    %11 = arith.cmpi eq, %3, %10 : vector<48x128xi32>
    %cst_4 = arith.constant 1.000000e+00 : f32
    %cst_5 = arith.constant 0.000000e+00 : f32
    %12 = vector.broadcast %cst_4 : f32 to vector<48x128xf32>
    %13 = vector.broadcast %cst_5 : f32 to vector<48x128xf32>
    %14 = arith.select %11, %12, %13 : vector<48x128xi1>, vector<48x128xf32>
    %15 = arith.truncf %14 : vector<48x128xf32> to vector<48x128xbf16>
    %c0_6 = arith.constant 0 : index
    %c0_7 = arith.constant 0 : index
    %16 = vector.load %arg3[%c0_6, %c0_7] : memref<32x64xbf16, #tpu.memory_space<vmem>>, vector<32x64xbf16>
    %cst_8 = arith.constant dense<0.000000e+00> : vector<32x128xf32>
    %17 = tpu.matmul %16, %9, %cst_8 {dimension_numbers = #tpu.dot_dimension_numbers<[1], [0], [0], [1], [0, 0, 1, 1], [], []>} : vector<32x64xbf16>, vector<64x128xbf16>, vector<32x128xf32> -> vector<32x128xf32>
    %18 = arith.truncf %17 : vector<32x128xf32> to vector<32x128xbf16>
    %c0_9 = arith.constant 0 : index
    %c0_10 = arith.constant 0 : index
    %19 = vector.load %arg4[%c0_9, %c0_10] : memref<32x48xbf16, #tpu.memory_space<vmem>>, vector<32x48xbf16>
    %cst_11 = arith.constant dense<0.000000e+00> : vector<32x128xf32>
    %20 = tpu.matmul %19, %15, %cst_11 {dimension_numbers = #tpu.dot_dimension_numbers<[1], [0], [0], [1], [0, 0, 1, 1], [], []>} : vector<32x48xbf16>, vector<48x128xbf16>, vector<32x128xf32> -> vector<32x128xf32>
    %21 = arith.truncf %20 : vector<32x128xf32> to vector<32x128xbf16>
    %c0_12 = arith.constant 0 : index
    %c0_13 = arith.constant 0 : index
    %22 = vector.load %arg5[%c0_12, %c0_13] : memref<128x32xbf16, #tpu.memory_space<vmem>>, vector<128x32xbf16>
    %cst_14 = arith.constant dense<0.000000e+00> : vector<128x128xf32>
    %23 = tpu.matmul %22, %18, %cst_14 {dimension_numbers = #tpu.dot_dimension_numbers<[1], [0], [0], [1], [0, 0, 1, 1], [], []>} : vector<128x32xbf16>, vector<32x128xbf16>, vector<128x128xf32> -> vector<128x128xf32>
    %c0_15 = arith.constant 0 : index
    %c0_16 = arith.constant 0 : index
    %24 = vector.load %arg6[%c0_15, %c0_16] : memref<128x32xbf16, #tpu.memory_space<vmem>>, vector<128x32xbf16>
    %cst_17 = arith.constant dense<0.000000e+00> : vector<128x128xf32>
    %25 = tpu.matmul %24, %21, %cst_17 {dimension_numbers = #tpu.dot_dimension_numbers<[1], [0], [0], [1], [0, 0, 1, 1], [], []>} : vector<128x32xbf16>, vector<32x128xbf16>, vector<128x128xf32> -> vector<128x128xf32>
    %26 = arith.addf %23, %25 : vector<128x128xf32>
    %27 = arith.truncf %26 : vector<128x128xf32> to vector<128x128xbf16>
    %c0_18 = arith.constant 0 : index
    %c0_19 = arith.constant 0 : index
    %28 = vector.load %arg7[%c0_18, %c0_19] : memref<128x1xbf16, #tpu.memory_space<vmem>>, vector<128x1xbf16>
    %29 = vector.broadcast %28 : vector<128x1xbf16> to vector<128x128xbf16>
    %30 = arith.addf %27, %29 : vector<128x128xbf16>
    %cst_20 = arith.constant 0.000000e+00 : bf16
    %31 = vector.broadcast %cst_20 : bf16 to vector<128x128xbf16>
    %32 = arith.maximumf %30, %31 : vector<128x128xbf16>
    %c0_21 = arith.constant 0 : index
    %c0_22 = arith.constant 0 : index
    %33 = vector.load %arg8[%c0_21, %c0_22] : memref<128x128xbf16, #tpu.memory_space<vmem>>, vector<128x128xbf16>
    %cst_23 = arith.constant dense<0.000000e+00> : vector<128x128xf32>
    %34 = tpu.matmul %33, %32, %cst_23 {dimension_numbers = #tpu.dot_dimension_numbers<[1], [0], [0], [1], [0, 0, 1, 1], [], []>} : vector<128x128xbf16>, vector<128x128xbf16>, vector<128x128xf32> -> vector<128x128xf32>
    %c0_24 = arith.constant 0 : index
    %c0_25 = arith.constant 0 : index
    %35 = vector.load %arg9[%c0_24, %c0_25] : memref<128x1xf32, #tpu.memory_space<vmem>>, vector<128x1xf32>
    %36 = vector.broadcast %35 : vector<128x1xf32> to vector<128x128xf32>
    %37 = arith.addf %34, %36 : vector<128x128xf32>
    %cst_26 = arith.constant 0.000000e+00 : f32
    %38 = vector.broadcast %cst_26 : f32 to vector<128x128xf32>
    %39 = arith.maximumf %37, %38 : vector<128x128xf32>
    %c0_27 = arith.constant 0 : index
    %c0_28 = arith.constant 0 : index
    %40 = vector.load %arg10[%c0_27, %c0_28] : memref<128x1xbf16, #tpu.memory_space<vmem>>, vector<128x1xbf16>
    %41 = arith.extf %40 : vector<128x1xbf16> to vector<128x1xf32>
    %42 = vector.broadcast %41 : vector<128x1xf32> to vector<128x128xf32>
    %43 = arith.mulf %39, %42 : vector<128x128xf32>
    %cst_29 = arith.constant dense<0.000000e+00> : vector<128xf32>
    %44 = vector.multi_reduction <add>, %43, %cst_29 [0] : vector<128x128xf32> to vector<128xf32>
    %45 = vector.shape_cast %44 : vector<128xf32> to vector<1x128xf32>
    %c0_30 = arith.constant 0 : index
    %c0_31 = arith.constant 0 : index
    %46 = memref.load %arg11[%c0_30, %c0_31] : memref<1x1xf32, #tpu.memory_space<smem>>
    %47 = vector.broadcast %46 : f32 to vector<1x128xf32>
    %48 = arith.addf %45, %47 : vector<1x128xf32>
    %cst_32 = arith.constant 0.000000e+00 : f32
    %49 = vector.broadcast %cst_32 : f32 to vector<1x128xf32>
    %50 = arith.subf %49, %48 : vector<1x128xf32>
    %51 = math.exp %50 : vector<1x128xf32>
    %cst_33 = arith.constant 1.000000e+00 : f32
    %52 = vector.broadcast %cst_33 : f32 to vector<1x128xf32>
    %53 = arith.addf %52, %51 : vector<1x128xf32>
    %cst_34 = arith.constant 1.000000e+00 : f32
    %54 = vector.broadcast %cst_34 : f32 to vector<1x128xf32>
    %55 = arith.divf %54, %53 : vector<1x128xf32>
    %cst_35 = arith.constant 4.000000e+00 : f32
    %56 = vector.broadcast %cst_35 : f32 to vector<1x128xf32>
    %57 = arith.mulf %55, %56 : vector<1x128xf32>
    %cst_36 = arith.constant 1.000000e+00 : f32
    %58 = vector.broadcast %cst_36 : f32 to vector<1x128xf32>
    %59 = arith.addf %57, %58 : vector<1x128xf32>
    %c0_37 = arith.constant 0 : index
    %c0_38 = arith.constant 0 : index
    %c0_39 = arith.constant 0 : index
    %60 = vector.load %arg12[%c0_37, %c0_38, %c0_39] : memref<1x1x128xf32, #tpu.memory_space<vmem>>, vector<1x1x128xf32>
    %61 = vector.shape_cast %60 : vector<1x1x128xf32> to vector<1x128xf32>
    %62 = vector.shape_cast %59 : vector<1x128xf32> to vector<1x1x128xf32>
    tpu.vector_store %arg12[%c0_37, %c0_38, %c0_39], %62 {strides = array<i32>} : memref<1x1x128xf32, #tpu.memory_space<vmem>>, vector<1x1x128xf32>,
    return
  }
  func.func @transform_0(%arg0: i32) -> (i32, i32) {
    %c0_i32 = arith.constant 0 : i32
    %c0_i32_0 = arith.constant 0 : i32
    return %c0_i32, %arg0 : i32, i32
  }
  func.func @transform_1(%arg0: i32) -> (i32, i32) {
    %c0_i32 = arith.constant 0 : i32
    %c0_i32_0 = arith.constant 0 : i32
    return %c0_i32, %arg0 : i32, i32
  }
  func.func @transform_2(%arg0: i32) -> (i32, i32) {
    %c0_i32 = arith.constant 0 : i32
    %c0_i32_0 = arith.constant 0 : i32
    %c0_i32_1 = arith.constant 0 : i32
    return %c0_i32, %c0_i32_0 : i32, i32
  }
  func.func @transform_3(%arg0: i32) -> (i32, i32) {
    %c0_i32 = arith.constant 0 : i32
    %c0_i32_0 = arith.constant 0 : i32
    %c0_i32_1 = arith.constant 0 : i32
    return %c0_i32, %c0_i32_0 : i32, i32
  }
  func.func @transform_4(%arg0: i32) -> (i32, i32) {
    %c0_i32 = arith.constant 0 : i32
    %c0_i32_0 = arith.constant 0 : i32
    %c0_i32_1 = arith.constant 0 : i32
    return %c0_i32, %c0_i32_0 : i32, i32
  }
  func.func @transform_5(%arg0: i32) -> (i32, i32) {
    %c0_i32 = arith.constant 0 : i32
    %c0_i32_0 = arith.constant 0 : i32
    %c0_i32_1 = arith.constant 0 : i32
    return %c0_i32, %c0_i32_0 : i32, i32
  }
  func.func @transform_6(%arg0: i32) -> (i32, i32) {
    %c0_i32 = arith.constant 0 : i32
    %c0_i32_0 = arith.constant 0 : i32
    %c0_i32_1 = arith.constant 0 : i32
    return %c0_i32, %c0_i32_0 : i32, i32
  }
  func.func @transform_7(%arg0: i32) -> (i32, i32) {
    %c0_i32 = arith.constant 0 : i32
    %c0_i32_0 = arith.constant 0 : i32
    %c0_i32_1 = arith.constant 0 : i32
    return %c0_i32, %c0_i32_0 : i32, i32
  }
  func.func @transform_8(%arg0: i32) -> (i32, i32) {
    %c0_i32 = arith.constant 0 : i32
    %c0_i32_0 = arith.constant 0 : i32
    %c0_i32_1 = arith.constant 0 : i32
    return %c0_i32, %c0_i32_0 : i32, i32
  }
  func.func @transform_9(%arg0: i32) -> (i32, i32) {
    %c0_i32 = arith.constant 0 : i32
    %c0_i32_0 = arith.constant 0 : i32
    %c0_i32_1 = arith.constant 0 : i32
    return %c0_i32, %c0_i32_0 : i32, i32
  }
  func.func @transform_10(%arg0: i32) -> (i32, i32) {
    %c0_i32 = arith.constant 0 : i32
    %c0_i32_0 = arith.constant 0 : i32
    %c0_i32_1 = arith.constant 0 : i32
    return %c0_i32, %c0_i32_0 : i32, i32
  }
  func.func @transform_11(%arg0: i32) -> (i32, i32, i32) {
    %c0_i32 = arith.constant 0 : i32
    %c0_i32_0 = arith.constant 0 : i32
    %c0_i32_1 = arith.constant 0 : i32
    return %arg0, %c0_i32, %c0_i32_0 : i32, i32, i32
  }
}

</mosaic_0001>

<llo_original>
// kernel: tpu_custom_call.1
$region0: #{tpu_custom_call.1}
  #allocation0 [shape = 'u32[]', space=smem, size = 0x4, offset = 0x4, fixed_abs, tag = 'smem constant byte address 0x4 - core index']
  #allocation1 [shape = 'u32[144,128]{1,0:T(1,128)}', space=vmem, size = 0x12000, scoped, tag = 'internal scratch']
  #allocation2 [shape = 'f32[1,1]{1,0:T(1,128)S(6)}', space=smem, size = 0x200, scoped, tag = 'scoped memory for tpu_custom_call.1']
  %s0 = inlined_call_operand.vmem [shape: s32[1,128], index: 0, kind: input, shape index: {}]
  %s1 = inlined_call_operand.vmem [shape: s32[1,128], index: 1, kind: input, shape index: {}]
  %s2 = inlined_call_operand.vmem [shape: bf16[32,64], index: 2, kind: input, shape index: {}]
  %s3 = inlined_call_operand.vmem [shape: bf16[32,48], index: 3, kind: input, shape index: {}]
  %s4 = inlined_call_operand.vmem [shape: bf16[128,32], index: 4, kind: input, shape index: {}]
  %s5 = inlined_call_operand.vmem [shape: bf16[128,32], index: 5, kind: input, shape index: {}]
  %s6 = inlined_call_operand.vmem [shape: bf16[128,1], index: 6, kind: input, shape index: {}]
  %s7 = inlined_call_operand.vmem [shape: bf16[128,128], index: 7, kind: input, shape index: {}]
  %s8 = inlined_call_operand.vmem [shape: f32[128,1], index: 8, kind: input, shape index: {}]
  %s9 = inlined_call_operand.vmem [shape: bf16[128,1], index: 9, kind: input, shape index: {}]
  %s10 = inlined_call_operand.<no memory space> [shape: f32[1,1], index: 10, kind: input, shape index: {}]
  %s11 = inlined_call_operand.hbm [shape: f32[1,1,128], index: 11, kind: output, shape index: {}]
  %s12 = sld [smem:[#allocation0]]
  $region54: #{tpu_custom_call.1} parent=0
    _
  %s14 = ssub.s32 1, %s12
  %s15 = scalar_select 0, %s14, %s12
  %16 = sst [smem:[#allocation2]] %s10
  $region1: #{tpu_custom_call.1} parent=0
    #allocation3 [shape = 'u8[512]{0}', space=vmem, size = 0x400, scoped, tag = 'output window, operand 0, single buffered']
    #allocation4 [shape = 's32[1]{0}', space=sflag, size = 0x4, scoped, tag = 'scoped memory for tpu_custom_call.1']
    %17 = vsyncpa [#allocation4], 0
    // Predicated region
    $region2: #{tpu_custom_call.1} parent=1 // pred_check
      _
    $region3: #{tpu_custom_call.1} parent=1 // pred_check_branch
      %19 = sbr.rel (0) target = $region5
    $region4: #{tpu_custom_call.1} parent=1 // pred_region
      _
    $region5: #{tpu_custom_call.1} parent=1 // pred_fallthru
      _
    // Predicated region
    $region6: #{tpu_custom_call.1} parent=1 // pred_check
      _
    $region7: #{tpu_custom_call.1} parent=1 // pred_check_branch
      %21 = sbr.rel (0) target = $region9
    $region8: #{tpu_custom_call.1} parent=1 // pred_region
      _
    $region9: #{tpu_custom_call.1} parent=1 // pred_fallthru
      _
    // Predicated region
    $region10: #{tpu_custom_call.1} parent=1 // pred_check
      _
    $region11: #{tpu_custom_call.1} parent=1 // pred_check_branch
      %23 = sbr.rel (0) target = $region13
    $region12: #{tpu_custom_call.1} parent=1 // pred_region
      _
    $region13: #{tpu_custom_call.1} parent=1 // pred_fallthru
      _
    // Predicated region
    $region14: #{tpu_custom_call.1} parent=1 // pred_check
      _
    $region15: #{tpu_custom_call.1} parent=1 // pred_check_branch
      %25 = sbr.rel (0) target = $region17
    $region16: #{tpu_custom_call.1} parent=1 // pred_region
      _
    $region17: #{tpu_custom_call.1} parent=1 // pred_fallthru
      _
    // Predicated region
    $region18: #{tpu_custom_call.1} parent=1 // pred_check
      _
    $region19: #{tpu_custom_call.1} parent=1 // pred_check_branch
      %27 = sbr.rel (0) target = $region21
    $region20: #{tpu_custom_call.1} parent=1 // pred_region
      _
    $region21: #{tpu_custom_call.1} parent=1 // pred_fallthru
      _
    // Predicated region
    $region22: #{tpu_custom_call.1} parent=1 // pred_check
      _
    $region23: #{tpu_custom_call.1} parent=1 // pred_check_branch
      %29 = sbr.rel (0) target = $region25
    $region24: #{tpu_custom_call.1} parent=1 // pred_region
      _
    $region25: #{tpu_custom_call.1} parent=1 // pred_fallthru
      _
    // Predicated region
    $region26: #{tpu_custom_call.1} parent=1 // pred_check
      _
    $region27: #{tpu_custom_call.1} parent=1 // pred_check_branch
      %31 = sbr.rel (0) target = $region29
    $region28: #{tpu_custom_call.1} parent=1 // pred_region
      _
    $region29: #{tpu_custom_call.1} parent=1 // pred_fallthru
      _
    // Predicated region
    $region30: #{tpu_custom_call.1} parent=1 // pred_check
      _
    $region31: #{tpu_custom_call.1} parent=1 // pred_check_branch
      %33 = sbr.rel (0) target = $region33
    $region32: #{tpu_custom_call.1} parent=1 // pred_region
      _
    $region33: #{tpu_custom_call.1} parent=1 // pred_fallthru
      _
    // Predicated region
    $region34: #{tpu_custom_call.1} parent=1 // pred_check
      _
    $region35: #{tpu_custom_call.1} parent=1 // pred_check_branch
      %35 = sbr.rel (0) target = $region37
    $region36: #{tpu_custom_call.1} parent=1 // pred_region
      _
    $region37: #{tpu_custom_call.1} parent=1 // pred_fallthru
      _
    // Predicated region
    $region38: #{tpu_custom_call.1} parent=1 // pred_check
      _
    $region39: #{tpu_custom_call.1} parent=1 // pred_check_branch
      %37 = sbr.rel (0) target = $region41
    $region40: #{tpu_custom_call.1} parent=1 // pred_region
      _
    $region41: #{tpu_custom_call.1} parent=1 // pred_fallthru
      _
    // Predicated region
    $region42: #{tpu_custom_call.1} parent=1 // pred_check
      _
    $region43: #{tpu_custom_call.1} parent=1 // pred_check_branch
      %39 = sbr.rel (0) target = $region45
    $region44: #{tpu_custom_call.1} parent=1 // pred_region
      _
    $region45: #{tpu_custom_call.1} parent=1 // pred_fallthru
      _
    %v41 = vld [vmem:[%s0] sm:$0x1]
    %v42 = vld [vmem:[%s1] sm:$0x1]
    %v43 = vlaneseq
    %v44 = vshrl.u32 %v43, 7
    %v45 = vadd.s32 %v44, 8
    %v46 = vadd.s32 %v44, 16
    %v47 = vadd.s32 %v44, 24
    %v48 = vadd.s32 %v44, 32
    %v49 = vadd.s32 %v44, 40
    %v50 = vadd.s32 %v44, 48
    %v51 = vadd.s32 %v44, 56
    %v52 = vlaneseq
    %v53 = vshrl.u32 %v52, 7
    %v54 = vsub.s32 0, %v53
    %v55 = vrot.slane %v41, %v54
    %vm56 = vcmp.eq.s32.totalorder %v44, %v55
    %vm57 = vcmp.eq.s32.totalorder %v45, %v55
    %vm58 = vcmp.eq.s32.totalorder %v46, %v55
    %vm59 = vcmp.eq.s32.totalorder %v47, %v55
    %vm60 = vcmp.eq.s32.totalorder %v48, %v55
    %vm61 = vcmp.eq.s32.totalorder %v49, %v55
    %vm62 = vcmp.eq.s32.totalorder %v50, %v55
    %vm63 = vcmp.eq.s32.totalorder %v51, %v55
    %v64 = vsel %vm56, 1.0, 0.0
    %v65 = vsel %vm57, 1.0, 0.0
    %v66 = vsel %vm58, 1.0, 0.0
    %v67 = vsel %vm59, 1.0, 0.0
    %v68 = vsel %vm60, 1.0, 0.0
    %v69 = vsel %vm61, 1.0, 0.0
    %v70 = vsel %vm62, 1.0, 0.0
    %v71 = vsel %vm63, 1.0, 0.0
    %v72 = vpack.c.bf16 %v65, %v64
    %v73 = vpack.c.bf16 %v67, %v66
    %v74 = vpack.c.bf16 %v69, %v68
    %v75 = vpack.c.bf16 %v71, %v70
    %v76 = vlaneseq
    %v77 = vshrl.u32 %v76, 7
    %v78 = vsub.s32 0, %v77
    %v79 = vrot.slane %v42, %v78
    %vm80 = vcmp.eq.s32.totalorder %v44, %v79
    %vm81 = vcmp.eq.s32.totalorder %v45, %v79
    %vm82 = vcmp.eq.s32.totalorder %v46, %v79
    %vm83 = vcmp.eq.s32.totalorder %v47, %v79
    %vm84 = vcmp.eq.s32.totalorder %v48, %v79
    %vm85 = vcmp.eq.s32.totalorder %v49, %v79
    %v86 = vsel %vm80, 1.0, 0.0
    %v87 = vsel %vm81, 1.0, 0.0
    %v88 = vsel %vm82, 1.0, 0.0
    %v89 = vsel %vm83, 1.0, 0.0
    %v90 = vsel %vm84, 1.0, 0.0
    %v91 = vsel %vm85, 1.0, 0.0
    %v92 = vpack.c.bf16 %v87, %v86
    %v93 = vpack.c.bf16 %v89, %v88
    %v94 = vpack.c.bf16 %v91, %v90
    %v95 = vld [vmem:[%s2] sm:$0xf]
    %v96 = vld [vmem:[%s2 + $0x4] sm:$0xf]
    %v97 = vld [vmem:[%s2 + $0x8] sm:$0xf]
    %v98 = vld [vmem:[%s2 + $0xc] sm:$0xf]
    %v103 = vunpack.c.l.b16 %v95
    %v104 = vunpack.c.l.b16 %v96
    %v105 = vunpack.c.l.b16 %v97
    %v106 = vunpack.c.l.b16 %v98
    %v107 = vpack.c.b16 %v104, %v103
    %v108 = vpack.c.b16 %v106, %v105
    %vm109 = vcmask 523264
    %v111 = vsel %vm109, %v107, 0
    %v114 = vsel %vm109, %v108, 0
    %116 = vmatprep.subr.bf16.mxu0 0
    %117 = vmatpush1.bf16.msra.mxu0 0
    %118 = vmatprep.subr.bf16.mxu0 0
    %119 = vmatpush1.bf16.msra.mxu0 0
    %120 = vmatprep.subr.bf16.mxu0 0
    %121 = vmatpush1.bf16.msra.mxu0 0
    %122 = vmatprep.subr.bf16.mxu0 0
    %123 = vmatpush1.bf16.msra.mxu0 0
    %124 = vmatprep.subr.bf16.mxu0 0
    %125 = vmatpush1.bf16.msra.mxu0 %v75
    %126 = vmatprep.subr.bf16.mxu0 0
    %127 = vmatpush1.bf16.msra.mxu0 %v74
    %128 = vmatprep.subr.bf16.mxu0 0
    %129 = vmatpush1.bf16.msra.mxu0 %v73
    %130 = vmatprep.subr.bf16.mxu0 0
    %131 = vmatpush1.bf16.msra.mxu0 %v72
    %132 = vmatprep.subr.bf16.mxu0 0
    %133 = vmatpush2.bf16.msra.mxu0 0
    %134 = vmatprep.subr.bf16.mxu0 0
    %135 = vmatpush2.bf16.msra.mxu0 0
    %136 = vmatprep.subr.bf16.mxu0 0
    %137 = vmatpush2.bf16.msra.mxu0 0
    %138 = vmatprep.subr.bf16.mxu0 0
    %139 = vmatpush2.bf16.msra.mxu0 0
    %140 = vmatprep.subr.bf16.mxu0 0
    %141 = vmatpush2.bf16.msra.mxu0 0
    %142 = vmatprep.subr.bf16.mxu0 0
    %143 = vmatpush2.bf16.msra.mxu0 0
    %144 = vmatprep.subr.bf16.mxu0 0
    %145 = vmatpush2.bf16.msra.mxu0 0
    %146 = vmatprep.subr.bf16.mxu0 0
    %147 = vmatpush2.bf16.msra.mxu0 0
    %148 = vmatprep.mubr.bf16.mxu0 0
    %149 = vmatmul.mubr.bf16.gmra.mxu0 %v111
    %v150 = vpop.f32.mrf.mxu0
    %v151 = vadd.f32 0.0, %v150
    %v152 = vpop.f32.mrf.mxu0
    %v153 = vpop.f32.mrf.mxu0
    %v154 = vadd.f32 0.0, %v153
    %v155 = vpop.f32.mrf.mxu0
    %156 = vmatprep.mubr.bf16.mxu0 0
    %157 = vmatmul.mubr.bf16.gmra.mxu0 %v114
    %v158 = vpop.f32.mrf.mxu0
    %v159 = vadd.f32 0.0, %v158
    %v160 = vpop.f32.mrf.mxu0
    %v161 = vpop.f32.mrf.mxu0
    %v162 = vadd.f32 0.0, %v161
    %v163 = vpop.f32.mrf.mxu0
    %164 = vdwg.mxu0
    %v165 = vpack.c.bf16 %v154, %v151
    %v166 = vpack.c.bf16 %v162, %v159
    %v167 = vld [vmem:[%s3] sm:$0xf]
    %v168 = vld [vmem:[%s3 + $0x4] sm:$0xf]
    %v169 = vld [vmem:[%s3 + $0x8] sm:$0xf]
    %v170 = vld [vmem:[%s3 + $0xc] sm:$0xf]
    %v175 = vunpack.c.l.b16 %v167
    %v176 = vunpack.c.l.b16 %v168
    %v177 = vunpack.c.l.b16 %v169
    %v178 = vunpack.c.l.b16 %v170
    %v179 = vpack.c.b16 %v176, %v175
    %v180 = vpack.c.b16 %v178, %v177
    %vm181 = vcmask 392192
    %v183 = vsel %vm181, %v179, 0
    %v186 = vsel %vm181, %v180, 0
    %188 = vmatprep.subr.bf16.mxu0 0
    %189 = vmatpush1.bf16.msra.mxu0 0
    %190 = vmatprep.subr.bf16.mxu0 0
    %191 = vmatpush1.bf16.msra.mxu0 0
    %192 = vmatprep.subr.bf16.mxu0 0
    %193 = vmatpush1.bf16.msra.mxu0 0
    %194 = vmatprep.subr.bf16.mxu0 0
    %195 = vmatpush1.bf16.msra.mxu0 0
    %196 = vmatprep.subr.bf16.mxu0 0
    %197 = vmatpush1.bf16.msra.mxu0 0
    %198 = vmatprep.subr.bf16.mxu0 0
    %199 = vmatpush1.bf16.msra.mxu0 %v94
    %200 = vmatprep.subr.bf16.mxu0 0
    %201 = vmatpush1.bf16.msra.mxu0 %v93
    %202 = vmatprep.subr.bf16.mxu0 0
    %203 = vmatpush1.bf16.msra.mxu0 %v92
    %204 = vmatprep.subr.bf16.mxu0 0
    %205 = vmatpush2.bf16.msra.mxu0 0
    %206 = vmatprep.subr.bf16.mxu0 0
    %207 = vmatpush2.bf16.msra.mxu0 0
    %208 = vmatprep.subr.bf16.mxu0 0
    %209 = vmatpush2.bf16.msra.mxu0 0
    %210 = vmatprep.subr.bf16.mxu0 0
    %211 = vmatpush2.bf16.msra.mxu0 0
    %212 = vmatprep.subr.bf16.mxu0 0
    %213 = vmatpush2.bf16.msra.mxu0 0
    %214 = vmatprep.subr.bf16.mxu0 0
    %215 = vmatpush2.bf16.msra.mxu0 0
    %216 = vmatprep.subr.bf16.mxu0 0
    %217 = vmatpush2.bf16.msra.mxu0 0
    %218 = vmatprep.subr.bf16.mxu0 0
    %219 = vmatpush2.bf16.msra.mxu0 0
    %220 = vmatprep.mubr.bf16.mxu0 0
    %221 = vmatmul.mubr.bf16.gmra.mxu0 %v183
    %v222 = vpop.f32.mrf.mxu0
    %v223 = vadd.f32 0.0, %v222
    %v224 = vpop.f32.mrf.mxu0
    %v225 = vpop.f32.mrf.mxu0
    %v226 = vadd.f32 0.0, %v225
    %v227 = vpop.f32.mrf.mxu0
    %228 = vmatprep.mubr.bf16.mxu0 0
    %229 = vmatmul.mubr.bf16.gmra.mxu0 %v186
    %v230 = vpop.f32.mrf.mxu0
    %v231 = vadd.f32 0.0, %v230
    %v232 = vpop.f32.mrf.mxu0
    %v233 = vpop.f32.mrf.mxu0
    %v234 = vadd.f32 0.0, %v233
    %v235 = vpop.f32.mrf.mxu0
    %236 = vdwg.mxu0
    %v237 = vpack.c.bf16 %v226, %v223
    %v238 = vpack.c.bf16 %v234, %v231
    %v239 = vld [vmem:[%s4] sm:$0xf]
    %v240 = vld [vmem:[%s4 + $0x4] sm:$0xf]
    %v241 = vld [vmem:[%s4 + $0x8] sm:$0xf]
    %v242 = vld [vmem:[%s4 + $0xc] sm:$0xf]
    %v243 = vld [vmem:[%s4 + $0x10] sm:$0xf]
    %v244 = vld [vmem:[%s4 + $0x14] sm:$0xf]
    %v245 = vld [vmem:[%s4 + $0x18] sm:$0xf]
    %v246 = vld [vmem:[%s4 + $0x1c] sm:$0xf]
    %v247 = vld [vmem:[%s4 + $0x20] sm:$0xf]
    %v248 = vld [vmem:[%s4 + $0x24] sm:$0xf]
    %v249 = vld [vmem:[%s4 + $0x28] sm:$0xf]
    %v250 = vld [vmem:[%s4 + $0x2c] sm:$0xf]
    %v251 = vld [vmem:[%s4 + $0x30] sm:$0xf]
    %v252 = vld [vmem:[%s4 + $0x34] sm:$0xf]
    %v253 = vld [vmem:[%s4 + $0x38] sm:$0xf]
    %v254 = vld [vmem:[%s4 + $0x3c] sm:$0xf]
    %v255 = vld [vmem:[%s5] sm:$0xf]
    %v256 = vld [vmem:[%s5 + $0x4] sm:$0xf]
    %v257 = vld [vmem:[%s5 + $0x8] sm:$0xf]
    %v258 = vld [vmem:[%s5 + $0xc] sm:$0xf]
    %v259 = vld [vmem:[%s5 + $0x10] sm:$0xf]
    %v260 = vld [vmem:[%s5 + $0x14] sm:$0xf]
    %v261 = vld [vmem:[%s5 + $0x18] sm:$0xf]
    %v262 = vld [vmem:[%s5 + $0x1c] sm:$0xf]
    %v263 = vld [vmem:[%s5 + $0x20] sm:$0xf]
    %v264 = vld [vmem:[%s5 + $0x24] sm:$0xf]
    %v265 = vld [vmem:[%s5 + $0x28] sm:$0xf]
    %v266 = vld [vmem:[%s5 + $0x2c] sm:$0xf]
    %v267 = vld [vmem:[%s5 + $0x30] sm:$0xf]
    %v268 = vld [vmem:[%s5 + $0x34] sm:$0xf]
    %v269 = vld [vmem:[%s5 + $0x38] sm:$0xf]
    %v270 = vld [vmem:[%s5 + $0x3c] sm:$0xf]
    %v287 = vunpack.c.l.b16 %v255
    %v288 = vunpack.c.l.b16 %v256
    %v289 = vunpack.c.l.b16 %v257
    %v290 = vunpack.c.l.b16 %v258
    %v291 = vunpack.c.l.b16 %v259
    %v292 = vunpack.c.l.b16 %v260
    %v293 = vunpack.c.l.b16 %v261
    %v294 = vunpack.c.l.b16 %v262
    %v295 = vunpack.c.l.b16 %v263
    %v296 = vunpack.c.l.b16 %v264
    %v297 = vunpack.c.l.b16 %v265
    %v298 = vunpack.c.l.b16 %v266
    %v299 = vunpack.c.l.b16 %v267
    %v300 = vunpack.c.l.b16 %v268
    %v301 = vunpack.c.l.b16 %v269
    %v302 = vunpack.c.l.b16 %v270
    %v303 = vpack.c.b16 %v288, %v287
    %v304 = vpack.c.b16 %v290, %v289
    %v305 = vpack.c.b16 %v292, %v291
    %v306 = vpack.c.b16 %v294, %v293
    %v307 = vpack.c.b16 %v296, %v295
    %v308 = vpack.c.b16 %v298, %v297
    %v309 = vpack.c.b16 %v300, %v299
    %v310 = vpack.c.b16 %v302, %v301
    %vm311 = vcmask 261120
    %v313 = vsel %vm311, %v303, 0
    %v316 = vsel %vm311, %v304, 0
    %v319 = vsel %vm311, %v305, 0
    %v322 = vsel %vm311, %v306, 0
    %v325 = vsel %vm311, %v307, 0
    %v328 = vsel %vm311, %v308, 0
    %v331 = vsel %vm311, %v309, 0
    %v334 = vsel %vm311, %v310, 0
    %336 = vmatprep.subr.bf16.mxu0 0
    %337 = vmatpush1.bf16.msra.mxu0 0
    %338 = vmatprep.subr.bf16.mxu0 0
    %339 = vmatpush1.bf16.msra.mxu0 0
    %340 = vmatprep.subr.bf16.mxu0 0
    %341 = vmatpush1.bf16.msra.mxu0 0
    %342 = vmatprep.subr.bf16.mxu0 0
    %343 = vmatpush1.bf16.msra.mxu0 0
    %344 = vmatprep.subr.bf16.mxu0 0
    %345 = vmatpush1.bf16.msra.mxu0 0
    %346 = vmatprep.subr.bf16.mxu0 0
    %347 = vmatpush1.bf16.msra.mxu0 0
    %348 = vmatprep.subr.bf16.mxu0 0
    %349 = vmatpush1.bf16.msra.mxu0 %v238
    %350 = vmatprep.subr.bf16.mxu0 0
    %351 = vmatpush1.bf16.msra.mxu0 %v237
    %352 = vmatprep.subr.bf16.mxu0 0
    %353 = vmatpush2.bf16.msra.mxu0 0
    %354 = vmatprep.subr.bf16.mxu0 0
    %355 = vmatpush2.bf16.msra.mxu0 0
    %356 = vmatprep.subr.bf16.mxu0 0
    %357 = vmatpush2.bf16.msra.mxu0 0
    %358 = vmatprep.subr.bf16.mxu0 0
    %359 = vmatpush2.bf16.msra.mxu0 0
    %360 = vmatprep.subr.bf16.mxu0 0
    %361 = vmatpush2.bf16.msra.mxu0 0
    %362 = vmatprep.subr.bf16.mxu0 0
    %363 = vmatpush2.bf16.msra.mxu0 0
    %364 = vmatprep.subr.bf16.mxu0 0
    %365 = vmatpush2.bf16.msra.mxu0 0
    %366 = vmatprep.subr.bf16.mxu0 0
    %367 = vmatpush2.bf16.msra.mxu0 0
    %368 = vmatprep.mubr.bf16.mxu0 0
    %369 = vmatmul.mubr.bf16.gmra.mxu0 %v313
    %v370 = vpop.f32.mrf.mxu0
    %v371 = vadd.f32 0.0, %v370
    %v372 = vpop.f32.mrf.mxu0
    %v373 = vpop.f32.mrf.mxu0
    %v374 = vadd.f32 0.0, %v373
    %v375 = vpop.f32.mrf.mxu0
    %376 = vmatprep.mubr.bf16.mxu0 0
    %377 = vmatmul.mubr.bf16.gmra.mxu0 %v316
    %v378 = vpop.f32.mrf.mxu0
    %v379 = vadd.f32 0.0, %v378
    %v380 = vpop.f32.mrf.mxu0
    %v381 = vpop.f32.mrf.mxu0
    %v382 = vadd.f32 0.0, %v381
    %v383 = vpop.f32.mrf.mxu0
    %384 = vmatprep.mubr.bf16.mxu0 0
    %385 = vmatmul.mubr.bf16.gmra.mxu0 %v319
    %v386 = vpop.f32.mrf.mxu0
    %v387 = vadd.f32 0.0, %v386
    %v388 = vpop.f32.mrf.mxu0
    %v389 = vpop.f32.mrf.mxu0
    %v390 = vadd.f32 0.0, %v389
    %v391 = vpop.f32.mrf.mxu0
    %392 = vmatprep.mubr.bf16.mxu0 0
    %393 = vmatmul.mubr.bf16.gmra.mxu0 %v322
    %v394 = vpop.f32.mrf.mxu0
    %v395 = vadd.f32 0.0, %v394
    %v396 = vpop.f32.mrf.mxu0
    %v397 = vpop.f32.mrf.mxu0
    %v398 = vadd.f32 0.0, %v397
    %v399 = vpop.f32.mrf.mxu0
    %400 = vmatprep.mubr.bf16.mxu0 0
    %401 = vmatmul.mubr.bf16.gmra.mxu0 %v325
    %v402 = vpop.f32.mrf.mxu0
    %v403 = vadd.f32 0.0, %v402
    %v404 = vpop.f32.mrf.mxu0
    %v405 = vpop.f32.mrf.mxu0
    %v406 = vadd.f32 0.0, %v405
    %v407 = vpop.f32.mrf.mxu0
    %408 = vmatprep.mubr.bf16.mxu0 0
    %409 = vmatmul.mubr.bf16.gmra.mxu0 %v328
    %v410 = vpop.f32.mrf.mxu0
    %v411 = vadd.f32 0.0, %v410
    %v412 = vpop.f32.mrf.mxu0
    %v413 = vpop.f32.mrf.mxu0
    %v414 = vadd.f32 0.0, %v413
    %v415 = vpop.f32.mrf.mxu0
    %416 = vmatprep.mubr.bf16.mxu0 0
    %417 = vmatmul.mubr.bf16.gmra.mxu0 %v331
    %v418 = vpop.f32.mrf.mxu0
    %v419 = vadd.f32 0.0, %v418
    %v420 = vpop.f32.mrf.mxu0
    %v421 = vpop.f32.mrf.mxu0
    %v422 = vadd.f32 0.0, %v421
    %v423 = vpop.f32.mrf.mxu0
    %424 = vmatprep.mubr.bf16.mxu0 0
    %425 = vmatmul.mubr.bf16.gmra.mxu0 %v334
    %v426 = vpop.f32.mrf.mxu0
    %v427 = vadd.f32 0.0, %v426
    %v428 = vpop.f32.mrf.mxu0
    %v429 = vpop.f32.mrf.mxu0
    %v430 = vadd.f32 0.0, %v429
    %v431 = vpop.f32.mrf.mxu0
    %432 = vdwg.mxu0
    %v449 = vunpack.c.l.b16 %v239
    %v450 = vunpack.c.l.b16 %v240
    %v451 = vunpack.c.l.b16 %v241
    %v452 = vunpack.c.l.b16 %v242
    %v453 = vunpack.c.l.b16 %v243
    %v454 = vunpack.c.l.b16 %v244
    %v455 = vunpack.c.l.b16 %v245
    %v456 = vunpack.c.l.b16 %v246
    %v457 = vunpack.c.l.b16 %v247
    %v458 = vunpack.c.l.b16 %v248
    %v459 = vunpack.c.l.b16 %v249
    %v460 = vunpack.c.l.b16 %v250
    %v461 = vunpack.c.l.b16 %v251
    %v462 = vunpack.c.l.b16 %v252
    %v463 = vunpack.c.l.b16 %v253
    %v464 = vunpack.c.l.b16 %v254
    %v465 = vpack.c.b16 %v450, %v449
    %v466 = vpack.c.b16 %v452, %v451
    %v467 = vpack.c.b16 %v454, %v453
    %v468 = vpack.c.b16 %v456, %v455
    %v469 = vpack.c.b16 %v458, %v457
    %v470 = vpack.c.b16 %v460, %v459
    %v471 = vpack.c.b16 %v462, %v461
    %v472 = vpack.c.b16 %v464, %v463
    %v474 = vsel %vm311, %v465, 0
    %v477 = vsel %vm311, %v466, 0
    %v480 = vsel %vm311, %v467, 0
    %v483 = vsel %vm311, %v468, 0
    %v486 = vsel %vm311, %v469, 0
    %v489 = vsel %vm311, %v470, 0
    %v492 = vsel %vm311, %v471, 0
    %v495 = vsel %vm311, %v472, 0
    %497 = vmatprep.subr.bf16.mxu0 0
    %498 = vmatpush1.bf16.msra.mxu0 0
    %499 = vmatprep.subr.bf16.mxu0 0
    %500 = vmatpush1.bf16.msra.mxu0 0
    %501 = vmatprep.subr.bf16.mxu0 0
    %502 = vmatpush1.bf16.msra.mxu0 0
    %503 = vmatprep.subr.bf16.mxu0 0
    %504 = vmatpush1.bf16.msra.mxu0 0
    %505 = vmatprep.subr.bf16.mxu0 0
    %506 = vmatpush1.bf16.msra.mxu0 0
    %507 = vmatprep.subr.bf16.mxu0 0
    %508 = vmatpush1.bf16.msra.mxu0 0
    %509 = vmatprep.subr.bf16.mxu0 0
    %510 = vmatpush1.bf16.msra.mxu0 %v166
    %511 = vmatprep.subr.bf16.mxu0 0
    %512 = vmatpush1.bf16.msra.mxu0 %v165
    %513 = vmatprep.subr.bf16.mxu0 0
    %514 = vmatpush2.bf16.msra.mxu0 0
    %515 = vmatprep.subr.bf16.mxu0 0
    %516 = vmatpush2.bf16.msra.mxu0 0
    %517 = vmatprep.subr.bf16.mxu0 0
    %518 = vmatpush2.bf16.msra.mxu0 0
    %519 = vmatprep.subr.bf16.mxu0 0
    %520 = vmatpush2.bf16.msra.mxu0 0
    %521 = vmatprep.subr.bf16.mxu0 0
    %522 = vmatpush2.bf16.msra.mxu0 0
    %523 = vmatprep.subr.bf16.mxu0 0
    %524 = vmatpush2.bf16.msra.mxu0 0
    %525 = vmatprep.subr.bf16.mxu0 0
    %526 = vmatpush2.bf16.msra.mxu0 0
    %527 = vmatprep.subr.bf16.mxu0 0
    %528 = vmatpush2.bf16.msra.mxu0 0
    %529 = vmatprep.mubr.bf16.mxu0 0
    %530 = vmatmul.mubr.bf16.gmra.mxu0 %v474
    %v531 = vpop.f32.mrf.mxu0
    %v532 = vadd.f32 %v371, %v531
    %v533 = vpop.f32.mrf.mxu0
    %v534 = vpop.f32.mrf.mxu0
    %v535 = vadd.f32 %v374, %v534
    %v536 = vpop.f32.mrf.mxu0
    %537 = vmatprep.mubr.bf16.mxu0 0
    %538 = vmatmul.mubr.bf16.gmra.mxu0 %v477
    %v539 = vpop.f32.mrf.mxu0
    %v540 = vadd.f32 %v379, %v539
    %v541 = vpop.f32.mrf.mxu0
    %v542 = vpop.f32.mrf.mxu0
    %v543 = vadd.f32 %v382, %v542
    %v544 = vpop.f32.mrf.mxu0
    %545 = vmatprep.mubr.bf16.mxu0 0
    %546 = vmatmul.mubr.bf16.gmra.mxu0 %v480
    %v547 = vpop.f32.mrf.mxu0
    %v548 = vadd.f32 %v387, %v547
    %v549 = vpop.f32.mrf.mxu0
    %v550 = vpop.f32.mrf.mxu0
    %v551 = vadd.f32 %v390, %v550
    %v552 = vpop.f32.mrf.mxu0
    %553 = vmatprep.mubr.bf16.mxu0 0
    %554 = vmatmul.mubr.bf16.gmra.mxu0 %v483
    %v555 = vpop.f32.mrf.mxu0
    %v556 = vadd.f32 %v395, %v555
    %v557 = vpop.f32.mrf.mxu0
    %v558 = vpop.f32.mrf.mxu0
    %v559 = vadd.f32 %v398, %v558
    %v560 = vpop.f32.mrf.mxu0
    %561 = vmatprep.mubr.bf16.mxu0 0
    %562 = vmatmul.mubr.bf16.gmra.mxu0 %v486
    %v563 = vpop.f32.mrf.mxu0
    %v564 = vadd.f32 %v403, %v563
    %v565 = vpop.f32.mrf.mxu0
    %v566 = vpop.f32.mrf.mxu0
    %v567 = vadd.f32 %v406, %v566
    %v568 = vpop.f32.mrf.mxu0
    %569 = vmatprep.mubr.bf16.mxu0 0
    %570 = vmatmul.mubr.bf16.gmra.mxu0 %v489
    %v571 = vpop.f32.mrf.mxu0
    %v572 = vadd.f32 %v411, %v571
    %v573 = vpop.f32.mrf.mxu0
    %v574 = vpop.f32.mrf.mxu0
    %v575 = vadd.f32 %v414, %v574
    %v576 = vpop.f32.mrf.mxu0
    %577 = vmatprep.mubr.bf16.mxu0 0
    %578 = vmatmul.mubr.bf16.gmra.mxu0 %v492
    %v579 = vpop.f32.mrf.mxu0
    %v580 = vadd.f32 %v419, %v579
    %v581 = vpop.f32.mrf.mxu0
    %v582 = vpop.f32.mrf.mxu0
    %v583 = vadd.f32 %v422, %v582
    %v584 = vpop.f32.mrf.mxu0
    %585 = vmatprep.mubr.bf16.mxu0 0
    %586 = vmatmul.mubr.bf16.gmra.mxu0 %v495
    %v587 = vpop.f32.mrf.mxu0
    %v588 = vadd.f32 %v427, %v587
    %v589 = vpop.f32.mrf.mxu0
    %v590 = vpop.f32.mrf.mxu0
    %v591 = vadd.f32 %v430, %v590
    %v592 = vpop.f32.mrf.mxu0
    %593 = vdwg.mxu0
    %v594 = vpack.c.bf16 %v535, %v532
    %v595 = vpack.c.bf16 %v543, %v540
    %v596 = vpack.c.bf16 %v551, %v548
    %v597 = vpack.c.bf16 %v559, %v556
    %v598 = vpack.c.bf16 %v567, %v564
    %v599 = vpack.c.bf16 %v575, %v572
    %v600 = vpack.c.bf16 %v583, %v580
    %v601 = vpack.c.bf16 %v591, %v588
    %v602 = vld [vmem:[%s6] sm:$0xf]
    %v603 = vld [vmem:[%s6 + $0x4] sm:$0xf]
    %v604 = vld [vmem:[%s6 + $0x8] sm:$0xf]
    %v605 = vld [vmem:[%s6 + $0xc] sm:$0xf]
    %v606 = vld [vmem:[%s6 + $0x10] sm:$0xf]
    %v607 = vld [vmem:[%s6 + $0x14] sm:$0xf]
    %v608 = vld [vmem:[%s6 + $0x18] sm:$0xf]
    %v609 = vld [vmem:[%s6 + $0x1c] sm:$0xf]
    %v610 = vld [vmem:[%s6 + $0x20] sm:$0xf]
    %v611 = vld [vmem:[%s6 + $0x24] sm:$0xf]
    %v612 = vld [vmem:[%s6 + $0x28] sm:$0xf]
    %v613 = vld [vmem:[%s6 + $0x2c] sm:$0xf]
    %v614 = vld [vmem:[%s6 + $0x30] sm:$0xf]
    %v615 = vld [vmem:[%s6 + $0x34] sm:$0xf]
    %v616 = vld [vmem:[%s6 + $0x38] sm:$0xf]
    %v617 = vld [vmem:[%s6 + $0x3c] sm:$0xf]
    %619 = vset.pattern.permute.xlu0 0
    %620 = vperm.xlu0 %619, %v602
    %v621 = vpop.permute.xlu0 %620
    %v624 = vunpack.c.l.s4 839922192
    %v625 = vunpack.c.0.s8 %v624
    %v626 = vlaneseq
    %v627 = vshrl.u32 %v626, 7
    %v628 = vsub.s32 %v625, %v627
    %v629 = vrot.slane %v621, %v628
    %631 = vset.pattern.permute.xlu0 0
    %632 = vperm.xlu0 %631, %v603
    %v633 = vpop.permute.xlu0 %632
    %v636 = vunpack.c.l.s4 839922192
    %v637 = vunpack.c.0.s8 %v636
    %v638 = vlaneseq
    %v639 = vshrl.u32 %v638, 7
    %v640 = vsub.s32 %v637, %v639
    %v641 = vrot.slane %v633, %v640
    %643 = vset.pattern.permute.xlu0 0
    %644 = vperm.xlu0 %643, %v604
    %v645 = vpop.permute.xlu0 %644
    %v648 = vunpack.c.l.s4 839922192
    %v649 = vunpack.c.0.s8 %v648
    %v650 = vlaneseq
    %v651 = vshrl.u32 %v650, 7
    %v652 = vsub.s32 %v649, %v651
    %v653 = vrot.slane %v645, %v652
    %655 = vset.pattern.permute.xlu0 0
    %656 = vperm.xlu0 %655, %v605
    %v657 = vpop.permute.xlu0 %656
    %v660 = vunpack.c.l.s4 839922192
    %v661 = vunpack.c.0.s8 %v660
    %v662 = vlaneseq
    %v663 = vshrl.u32 %v662, 7
    %v664 = vsub.s32 %v661, %v663
    %v665 = vrot.slane %v657, %v664
    %667 = vset.pattern.permute.xlu0 0
    %668 = vperm.xlu0 %667, %v606
    %v669 = vpop.permute.xlu0 %668
    %v672 = vunpack.c.l.s4 839922192
    %v673 = vunpack.c.0.s8 %v672
    %v674 = vlaneseq
    %v675 = vshrl.u32 %v674, 7
    %v676 = vsub.s32 %v673, %v675
    %v677 = vrot.slane %v669, %v676
    %679 = vset.pattern.permute.xlu0 0
    %680 = vperm.xlu0 %679, %v607
    %v681 = vpop.permute.xlu0 %680
    %v684 = vunpack.c.l.s4 839922192
    %v685 = vunpack.c.0.s8 %v684
    %v686 = vlaneseq
    %v687 = vshrl.u32 %v686, 7
    %v688 = vsub.s32 %v685, %v687
    %v689 = vrot.slane %v681, %v688
    %691 = vset.pattern.permute.xlu0 0
    %692 = vperm.xlu0 %691, %v608
    %v693 = vpop.permute.xlu0 %692
    %v696 = vunpack.c.l.s4 839922192
    %v697 = vunpack.c.0.s8 %v696
    %v698 = vlaneseq
    %v699 = vshrl.u32 %v698, 7
    %v700 = vsub.s32 %v697, %v699
    %v701 = vrot.slane %v693, %v700
    %703 = vset.pattern.permute.xlu0 0
    %704 = vperm.xlu0 %703, %v609
    %v705 = vpop.permute.xlu0 %704
    %v708 = vunpack.c.l.s4 839922192
    %v709 = vunpack.c.0.s8 %v708
    %v710 = vlaneseq
    %v711 = vshrl.u32 %v710, 7
    %v712 = vsub.s32 %v709, %v711
    %v713 = vrot.slane %v705, %v712
    %715 = vset.pattern.permute.xlu0 0
    %716 = vperm.xlu0 %715, %v610
    %v717 = vpop.permute.xlu0 %716
    %v720 = vunpack.c.l.s4 839922192
    %v721 = vunpack.c.0.s8 %v720
    %v722 = vlaneseq
    %v723 = vshrl.u32 %v722, 7
    %v724 = vsub.s32 %v721, %v723
    %v725 = vrot.slane %v717, %v724
    %727 = vset.pattern.permute.xlu0 0
    %728 = vperm.xlu0 %727, %v611
    %v729 = vpop.permute.xlu0 %728
    %v732 = vunpack.c.l.s4 839922192
    %v733 = vunpack.c.0.s8 %v732
    %v734 = vlaneseq
    %v735 = vshrl.u32 %v734, 7
    %v736 = vsub.s32 %v733, %v735
    %v737 = vrot.slane %v729, %v736
    %739 = vset.pattern.permute.xlu0 0
    %740 = vperm.xlu0 %739, %v612
    %v741 = vpop.permute.xlu0 %740
    %v744 = vunpack.c.l.s4 839922192
    %v745 = vunpack.c.0.s8 %v744
    %v746 = vlaneseq
    %v747 = vshrl.u32 %v746, 7
    %v748 = vsub.s32 %v745, %v747
    %v749 = vrot.slane %v741, %v748
    %751 = vset.pattern.permute.xlu0 0
    %752 = vperm.xlu0 %751, %v613
    %v753 = vpop.permute.xlu0 %752
    %v756 = vunpack.c.l.s4 839922192
    %v757 = vunpack.c.0.s8 %v756
    %v758 = vlaneseq
    %v759 = vshrl.u32 %v758, 7
    %v760 = vsub.s32 %v757, %v759
    %v761 = vrot.slane %v753, %v760
    %763 = vset.pattern.permute.xlu0 0
    %764 = vperm.xlu0 %763, %v614
    %v765 = vpop.permute.xlu0 %764
    %v768 = vunpack.c.l.s4 839922192
    %v769 = vunpack.c.0.s8 %v768
    %v770 = vlaneseq
    %v771 = vshrl.u32 %v770, 7
    %v772 = vsub.s32 %v769, %v771
    %v773 = vrot.slane %v765, %v772
    %775 = vset.pattern.permute.xlu0 0
    %776 = vperm.xlu0 %775, %v615
    %v777 = vpop.permute.xlu0 %776
    %v780 = vunpack.c.l.s4 839922192
    %v781 = vunpack.c.0.s8 %v780
    %v782 = vlaneseq
    %v783 = vshrl.u32 %v782, 7
    %v784 = vsub.s32 %v781, %v783
    %v785 = vrot.slane %v777, %v784
    %787 = vset.pattern.permute.xlu0 0
    %788 = vperm.xlu0 %787, %v616
    %v789 = vpop.permute.xlu0 %788
    %v792 = vunpack.c.l.s4 839922192
    %v793 = vunpack.c.0.s8 %v792
    %v794 = vlaneseq
    %v795 = vshrl.u32 %v794, 7
    %v796 = vsub.s32 %v793, %v795
    %v797 = vrot.slane %v789, %v796
    %799 = vset.pattern.permute.xlu0 0
    %800 = vperm.xlu0 %799, %v617
    %v801 = vpop.permute.xlu0 %800
    %v804 = vunpack.c.l.s4 839922192
    %v805 = vunpack.c.0.s8 %v804
    %v806 = vlaneseq
    %v807 = vshrl.u32 %v806, 7
    %v808 = vsub.s32 %v805, %v807
    %v809 = vrot.slane %v801, %v808
    %v826 = vunpack.c.l.b16 %v629
    %v827 = vunpack.c.l.b16 %v641
    %v828 = vunpack.c.l.b16 %v653
    %v829 = vunpack.c.l.b16 %v665
    %v830 = vunpack.c.l.b16 %v677
    %v831 = vunpack.c.l.b16 %v689
    %v832 = vunpack.c.l.b16 %v701
    %v833 = vunpack.c.l.b16 %v713
    %v834 = vunpack.c.l.b16 %v725
    %v835 = vunpack.c.l.b16 %v737
    %v836 = vunpack.c.l.b16 %v749
    %v837 = vunpack.c.l.b16 %v761
    %v838 = vunpack.c.l.b16 %v773
    %v839 = vunpack.c.l.b16 %v785
    %v840 = vunpack.c.l.b16 %v797
    %v841 = vunpack.c.l.b16 %v809
    %v842 = vpack.c.b16 %v827, %v826
    %v843 = vpack.c.b16 %v829, %v828
    %v844 = vpack.c.b16 %v831, %v830
    %v845 = vpack.c.b16 %v833, %v832
    %v846 = vpack.c.b16 %v835, %v834
    %v847 = vpack.c.b16 %v837, %v836
    %v848 = vpack.c.b16 %v839, %v838
    %v849 = vpack.c.b16 %v841, %v840
    %v858 = vadd.bf16 %v594, %v842
    %v859 = vadd.bf16 %v595, %v843
    %v860 = vadd.bf16 %v596, %v844
    %v861 = vadd.bf16 %v597, %v845
    %v862 = vadd.bf16 %v598, %v846
    %v863 = vadd.bf16 %v599, %v847
    %v864 = vadd.bf16 %v600, %v848
    %v865 = vadd.bf16 %v601, %v849
    %v866 = vmax.bf16 %v858, 0
    %v867 = vmax.bf16 %v859, 0
    %v868 = vmax.bf16 %v860, 0
    %v869 = vmax.bf16 %v861, 0
    %v870 = vmax.bf16 %v862, 0
    %v871 = vmax.bf16 %v863, 0
    %v872 = vmax.bf16 %v864, 0
    %v873 = vmax.bf16 %v865, 0
    %v874 = vld [vmem:[%s7] sm:$0xf]
    %v875 = vld [vmem:[%s7 + $0x4] sm:$0xf]
    %v876 = vld [vmem:[%s7 + $0x8] sm:$0xf]
    %v877 = vld [vmem:[%s7 + $0xc] sm:$0xf]
    %v878 = vld [vmem:[%s7 + $0x10] sm:$0xf]
    %v879 = vld [vmem:[%s7 + $0x14] sm:$0xf]
    %v880 = vld [vmem:[%s7 + $0x18] sm:$0xf]
    %v881 = vld [vmem:[%s7 + $0x1c] sm:$0xf]
    %v882 = vld [vmem:[%s7 + $0x20] sm:$0xf]
    %v883 = vld [vmem:[%s7 + $0x24] sm:$0xf]
    %v884 = vld [vmem:[%s7 + $0x28] sm:$0xf]
    %v885 = vld [vmem:[%s7 + $0x2c] sm:$0xf]
    %v886 = vld [vmem:[%s7 + $0x30] sm:$0xf]
    %v887 = vld [vmem:[%s7 + $0x34] sm:$0xf]
    %v888 = vld [vmem:[%s7 + $0x38] sm:$0xf]
    %v889 = vld [vmem:[%s7 + $0x3c] sm:$0xf]
    %v890 = vld [vmem:[%s8] sm:$0xff]
    %v891 = vld [vmem:[%s8 + $0x8] sm:$0xff]
    %v892 = vld [vmem:[%s8 + $0x10] sm:$0xff]
    %v893 = vld [vmem:[%s8 + $0x18] sm:$0xff]
    %v894 = vld [vmem:[%s8 + $0x20] sm:$0xff]
    %v895 = vld [vmem:[%s8 + $0x28] sm:$0xff]
    %v896 = vld [vmem:[%s8 + $0x30] sm:$0xff]
    %v897 = vld [vmem:[%s8 + $0x38] sm:$0xff]
    %v898 = vld [vmem:[%s8 + $0x40] sm:$0xff]
    %v899 = vld [vmem:[%s8 + $0x48] sm:$0xff]
    %v900 = vld [vmem:[%s8 + $0x50] sm:$0xff]
    %v901 = vld [vmem:[%s8 + $0x58] sm:$0xff]
    %v902 = vld [vmem:[%s8 + $0x60] sm:$0xff]
    %v903 = vld [vmem:[%s8 + $0x68] sm:$0xff]
    %v904 = vld [vmem:[%s8 + $0x70] sm:$0xff]
    %v905 = vld [vmem:[%s8 + $0x78] sm:$0xff]
    %907 = vset.pattern.permute.xlu0 0
    %908 = vperm.xlu0 %907, %v890
    %v909 = vpop.permute.xlu0 %908
    %912 = vset.pattern.permute.xlu0 0
    %913 = vperm.xlu0 %912, %v891
    %v914 = vpop.permute.xlu0 %913
    %917 = vset.pattern.permute.xlu0 0
    %918 = vperm.xlu0 %917, %v892
    %v919 = vpop.permute.xlu0 %918
    %922 = vset.pattern.permute.xlu0 0
    %923 = vperm.xlu0 %922, %v893
    %v924 = vpop.permute.xlu0 %923
    %927 = vset.pattern.permute.xlu0 0
    %928 = vperm.xlu0 %927, %v894
    %v929 = vpop.permute.xlu0 %928
    %932 = vset.pattern.permute.xlu0 0
    %933 = vperm.xlu0 %932, %v895
    %v934 = vpop.permute.xlu0 %933
    %937 = vset.pattern.permute.xlu0 0
    %938 = vperm.xlu0 %937, %v896
    %v939 = vpop.permute.xlu0 %938
    %942 = vset.pattern.permute.xlu0 0
    %943 = vperm.xlu0 %942, %v897
    %v944 = vpop.permute.xlu0 %943
    %947 = vset.pattern.permute.xlu0 0
    %948 = vperm.xlu0 %947, %v898
    %v949 = vpop.permute.xlu0 %948
    %952 = vset.pattern.permute.xlu0 0
    %953 = vperm.xlu0 %952, %v899
    %v954 = vpop.permute.xlu0 %953
    %957 = vset.pattern.permute.xlu0 0
    %958 = vperm.xlu0 %957, %v900
    %v959 = vpop.permute.xlu0 %958
    %962 = vset.pattern.permute.xlu0 0
    %963 = vperm.xlu0 %962, %v901
    %v964 = vpop.permute.xlu0 %963
    %967 = vset.pattern.permute.xlu0 0
    %968 = vperm.xlu0 %967, %v902
    %v969 = vpop.permute.xlu0 %968
    %972 = vset.pattern.permute.xlu0 0
    %973 = vperm.xlu0 %972, %v903
    %v974 = vpop.permute.xlu0 %973
    %977 = vset.pattern.permute.xlu0 0
    %978 = vperm.xlu0 %977, %v904
    %v979 = vpop.permute.xlu0 %978
    %982 = vset.pattern.permute.xlu0 0
    %983 = vperm.xlu0 %982, %v905
    %v984 = vpop.permute.xlu0 %983
    %v1002 = vunpack.c.l.b16 %v874
    %v1003 = vunpack.c.l.b16 %v875
    %v1004 = vunpack.c.l.b16 %v876
    %v1005 = vunpack.c.l.b16 %v877
    %v1006 = vunpack.c.l.b16 %v878
    %v1007 = vunpack.c.l.b16 %v879
    %v1008 = vunpack.c.l.b16 %v880
    %v1009 = vunpack.c.l.b16 %v881
    %v1010 = vunpack.c.l.b16 %v882
    %v1011 = vunpack.c.l.b16 %v883
    %v1012 = vunpack.c.l.b16 %v884
    %v1013 = vunpack.c.l.b16 %v885
    %v1014 = vunpack.c.l.b16 %v886
    %v1015 = vunpack.c.l.b16 %v887
    %v1016 = vunpack.c.l.b16 %v888
    %v1017 = vunpack.c.l.b16 %v889
    %v1018 = vpack.c.b16 %v1003, %v1002
    %v1019 = vpack.c.b16 %v1005, %v1004
    %v1020 = vpack.c.b16 %v1007, %v1006
    %v1021 = vpack.c.b16 %v1009, %v1008
    %v1022 = vpack.c.b16 %v1011, %v1010
    %v1023 = vpack.c.b16 %v1013, %v1012
    %v1024 = vpack.c.b16 %v1015, %v1014
    %v1025 = vpack.c.b16 %v1017, %v1016
    %1034 = vmatprep.subr.bf16.mxu0 0
    %1035 = vmatpush1.bf16.msra.mxu0 %v873
    %1036 = vmatprep.subr.bf16.mxu0 0
    %1037 = vmatpush1.bf16.msra.mxu0 %v872
    %1038 = vmatprep.subr.bf16.mxu0 0
    %1039 = vmatpush1.bf16.msra.mxu0 %v871
    %1040 = vmatprep.subr.bf16.mxu0 0
    %1041 = vmatpush1.bf16.msra.mxu0 %v870
    %1042 = vmatprep.subr.bf16.mxu0 0
    %1043 = vmatpush1.bf16.msra.mxu0 %v869
    %1044 = vmatprep.subr.bf16.mxu0 0
    %1045 = vmatpush1.bf16.msra.mxu0 %v868
    %1046 = vmatprep.subr.bf16.mxu0 0
    %1047 = vmatpush1.bf16.msra.mxu0 %v867
    %1048 = vmatprep.subr.bf16.mxu0 0
    %1049 = vmatpush1.bf16.msra.mxu0 %v866
    %1050 = vmatprep.subr.bf16.mxu0 0
    %1051 = vmatpush2.bf16.msra.mxu0 0
    %1052 = vmatprep.subr.bf16.mxu0 0
    %1053 = vmatpush2.bf16.msra.mxu0 0
    %1054 = vmatprep.subr.bf16.mxu0 0
    %1055 = vmatpush2.bf16.msra.mxu0 0
    %1056 = vmatprep.subr.bf16.mxu0 0
    %1057 = vmatpush2.bf16.msra.mxu0 0
    %1058 = vmatprep.subr.bf16.mxu0 0
    %1059 = vmatpush2.bf16.msra.mxu0 0
    %1060 = vmatprep.subr.bf16.mxu0 0
    %1061 = vmatpush2.bf16.msra.mxu0 0
    %1062 = vmatprep.subr.bf16.mxu0 0
    %1063 = vmatpush2.bf16.msra.mxu0 0
    %1064 = vmatprep.subr.bf16.mxu0 0
    %1065 = vmatpush2.bf16.msra.mxu0 0
    %1066 = vmatprep.mubr.bf16.mxu0 0
    %1067 = vmatmul.mubr.bf16.gmra.mxu0 %v1018
    %v1068 = vpop.f32.mrf.mxu0
    %v1069 = vadd.f32 %v909, %v1068
    %v1070 = vpop.f32.mrf.mxu0
    %v1071 = vpop.f32.mrf.mxu0
    %v1072 = vadd.f32 %v914, %v1071
    %v1073 = vpop.f32.mrf.mxu0
    %1074 = vmatprep.mubr.bf16.mxu0 0
    %1075 = vmatmul.mubr.bf16.gmra.mxu0 %v1019
    %v1076 = vpop.f32.mrf.mxu0
    %v1077 = vadd.f32 %v919, %v1076
    %v1078 = vpop.f32.mrf.mxu0
    %v1079 = vpop.f32.mrf.mxu0
    %v1080 = vadd.f32 %v924, %v1079
    %v1081 = vpop.f32.mrf.mxu0
    %1082 = vmatprep.mubr.bf16.mxu0 0
    %1083 = vmatmul.mubr.bf16.gmra.mxu0 %v1020
    %v1084 = vpop.f32.mrf.mxu0
    %v1085 = vadd.f32 %v929, %v1084
    %v1086 = vpop.f32.mrf.mxu0
    %v1087 = vpop.f32.mrf.mxu0
    %v1088 = vadd.f32 %v934, %v1087
    %v1089 = vpop.f32.mrf.mxu0
    %1090 = vmatprep.mubr.bf16.mxu0 0
    %1091 = vmatmul.mubr.bf16.gmra.mxu0 %v1021
    %v1092 = vpop.f32.mrf.mxu0
    %v1093 = vadd.f32 %v939, %v1092
    %v1094 = vpop.f32.mrf.mxu0
    %v1095 = vpop.f32.mrf.mxu0
    %v1096 = vadd.f32 %v944, %v1095
    %v1097 = vpop.f32.mrf.mxu0
    %1098 = vmatprep.mubr.bf16.mxu0 0
    %1099 = vmatmul.mubr.bf16.gmra.mxu0 %v1022
    %v1100 = vpop.f32.mrf.mxu0
    %v1101 = vadd.f32 %v949, %v1100
    %v1102 = vpop.f32.mrf.mxu0
    %v1103 = vpop.f32.mrf.mxu0
    %v1104 = vadd.f32 %v954, %v1103
    %v1105 = vpop.f32.mrf.mxu0
    %1106 = vmatprep.mubr.bf16.mxu0 0
    %1107 = vmatmul.mubr.bf16.gmra.mxu0 %v1023
    %v1108 = vpop.f32.mrf.mxu0
    %v1109 = vadd.f32 %v959, %v1108
    %v1110 = vpop.f32.mrf.mxu0
    %v1111 = vpop.f32.mrf.mxu0
    %v1112 = vadd.f32 %v964, %v1111
    %v1113 = vpop.f32.mrf.mxu0
    %1114 = vmatprep.mubr.bf16.mxu0 0
    %1115 = vmatmul.mubr.bf16.gmra.mxu0 %v1024
    %v1116 = vpop.f32.mrf.mxu0
    %v1117 = vadd.f32 %v969, %v1116
    %v1118 = vpop.f32.mrf.mxu0
    %v1119 = vpop.f32.mrf.mxu0
    %v1120 = vadd.f32 %v974, %v1119
    %v1121 = vpop.f32.mrf.mxu0
    %1122 = vmatprep.mubr.bf16.mxu0 0
    %1123 = vmatmul.mubr.bf16.gmra.mxu0 %v1025
    %v1124 = vpop.f32.mrf.mxu0
    %v1125 = vadd.f32 %v979, %v1124
    %v1126 = vpop.f32.mrf.mxu0
    %v1127 = vpop.f32.mrf.mxu0
    %v1128 = vadd.f32 %v984, %v1127
    %v1129 = vpop.f32.mrf.mxu0
    %1130 = vdwg.mxu0
    %v1131 = vmax.f32 %v1069, 0.0
    %v1132 = vmax.f32 %v1072, 0.0
    %v1133 = vmax.f32 %v1077, 0.0
    %v1134 = vmax.f32 %v1080, 0.0
    %v1135 = vmax.f32 %v1085, 0.0
    %v1136 = vmax.f32 %v1088, 0.0
    %v1137 = vmax.f32 %v1093, 0.0
    %v1138 = vmax.f32 %v1096, 0.0
    %v1139 = vmax.f32 %v1101, 0.0
    %v1140 = vmax.f32 %v1104, 0.0
    %v1141 = vmax.f32 %v1109, 0.0
    %v1142 = vmax.f32 %v1112, 0.0
    %v1143 = vmax.f32 %v1117, 0.0
    %v1144 = vmax.f32 %v1120, 0.0
    %v1145 = vmax.f32 %v1125, 0.0
    %v1146 = vmax.f32 %v1128, 0.0
    %v1147 = vld [vmem:[%s9] sm:$0xf]
    %v1148 = vld [vmem:[%s9 + $0x4] sm:$0xf]
    %v1149 = vld [vmem:[%s9 + $0x8] sm:$0xf]
    %v1150 = vld [vmem:[%s9 + $0xc] sm:$0xf]
    %v1151 = vld [vmem:[%s9 + $0x10] sm:$0xf]
    %v1152 = vld [vmem:[%s9 + $0x14] sm:$0xf]
    %v1153 = vld [vmem:[%s9 + $0x18] sm:$0xf]
    %v1154 = vld [vmem:[%s9 + $0x1c] sm:$0xf]
    %v1155 = vld [vmem:[%s9 + $0x20] sm:$0xf]
    %v1156 = vld [vmem:[%s9 + $0x24] sm:$0xf]
    %v1157 = vld [vmem:[%s9 + $0x28] sm:$0xf]
    %v1158 = vld [vmem:[%s9 + $0x2c] sm:$0xf]
    %v1159 = vld [vmem:[%s9 + $0x30] sm:$0xf]
    %v1160 = vld [vmem:[%s9 + $0x34] sm:$0xf]
    %v1161 = vld [vmem:[%s9 + $0x38] sm:$0xf]
    %v1162 = vld [vmem:[%s9 + $0x3c] sm:$0xf]
    %v1163 = vunpack.c.l.bf16 %v1147
    %v1164 = vunpack.c.l.bf16 %v1148
    %v1165 = vunpack.c.l.bf16 %v1149
    %v1166 = vunpack.c.l.bf16 %v1150
    %v1167 = vunpack.c.l.bf16 %v1151
    %v1168 = vunpack.c.l.bf16 %v1152
    %v1169 = vunpack.c.l.bf16 %v1153
    %v1170 = vunpack.c.l.bf16 %v1154
    %v1171 = vunpack.c.l.bf16 %v1155
    %v1172 = vunpack.c.l.bf16 %v1156
    %v1173 = vunpack.c.l.bf16 %v1157
    %v1174 = vunpack.c.l.bf16 %v1158
    %v1175 = vunpack.c.l.bf16 %v1159
    %v1176 = vunpack.c.l.bf16 %v1160
    %v1177 = vunpack.c.l.bf16 %v1161
    %v1178 = vunpack.c.l.bf16 %v1162
    %1180 = vset.pattern.permute.xlu0 0
    %1181 = vperm.xlu0 %1180, %v1163
    %v1182 = vpop.permute.xlu0 %1181
    %1185 = vset.pattern.permute.xlu0 0
    %1186 = vperm.xlu0 %1185, %v1164
    %v1187 = vpop.permute.xlu0 %1186
    %1190 = vset.pattern.permute.xlu0 0
    %1191 = vperm.xlu0 %1190, %v1165
    %v1192 = vpop.permute.xlu0 %1191
    %1195 = vset.pattern.permute.xlu0 0
    %1196 = vperm.xlu0 %1195, %v1166
    %v1197 = vpop.permute.xlu0 %1196
    %1200 = vset.pattern.permute.xlu0 0
    %1201 = vperm.xlu0 %1200, %v1167
    %v1202 = vpop.permute.xlu0 %1201
    %1205 = vset.pattern.permute.xlu0 0
    %1206 = vperm.xlu0 %1205, %v1168
    %v1207 = vpop.permute.xlu0 %1206
    %1210 = vset.pattern.permute.xlu0 0
    %1211 = vperm.xlu0 %1210, %v1169
    %v1212 = vpop.permute.xlu0 %1211
    %1215 = vset.pattern.permute.xlu0 0
    %1216 = vperm.xlu0 %1215, %v1170
    %v1217 = vpop.permute.xlu0 %1216
    %1220 = vset.pattern.permute.xlu0 0
    %1221 = vperm.xlu0 %1220, %v1171
    %v1222 = vpop.permute.xlu0 %1221
    %1225 = vset.pattern.permute.xlu0 0
    %1226 = vperm.xlu0 %1225, %v1172
    %v1227 = vpop.permute.xlu0 %1226
    %1230 = vset.pattern.permute.xlu0 0
    %1231 = vperm.xlu0 %1230, %v1173
    %v1232 = vpop.permute.xlu0 %1231
    %1235 = vset.pattern.permute.xlu0 0
    %1236 = vperm.xlu0 %1235, %v1174
    %v1237 = vpop.permute.xlu0 %1236
    %1240 = vset.pattern.permute.xlu0 0
    %1241 = vperm.xlu0 %1240, %v1175
    %v1242 = vpop.permute.xlu0 %1241
    %1245 = vset.pattern.permute.xlu0 0
    %1246 = vperm.xlu0 %1245, %v1176
    %v1247 = vpop.permute.xlu0 %1246
    %1250 = vset.pattern.permute.xlu0 0
    %1251 = vperm.xlu0 %1250, %v1177
    %v1252 = vpop.permute.xlu0 %1251
    %1255 = vset.pattern.permute.xlu0 0
    %1256 = vperm.xlu0 %1255, %v1178
    %v1257 = vpop.permute.xlu0 %1256
    %v1259 = vmul.f32 %v1131, %v1182
    %v1260 = vmul.f32 %v1132, %v1187
    %v1261 = vmul.f32 %v1133, %v1192
    %v1262 = vmul.f32 %v1134, %v1197
    %v1263 = vmul.f32 %v1135, %v1202
    %v1264 = vmul.f32 %v1136, %v1207
    %v1265 = vmul.f32 %v1137, %v1212
    %v1266 = vmul.f32 %v1138, %v1217
    %v1267 = vmul.f32 %v1139, %v1222
    %v1268 = vmul.f32 %v1140, %v1227
    %v1269 = vmul.f32 %v1141, %v1232
    %v1270 = vmul.f32 %v1142, %v1237
    %v1271 = vmul.f32 %v1143, %v1242
    %v1272 = vmul.f32 %v1144, %v1247
    %v1273 = vmul.f32 %v1145, %v1252
    %v1274 = vmul.f32 %v1146, %v1257
    %v1275 = vadd.f32 %v1259, %v1260
    %v1276 = vadd.f32 %v1275, %v1261
    %v1277 = vadd.f32 %v1276, %v1262
    %v1278 = vadd.f32 %v1277, %v1263
    %v1279 = vadd.f32 %v1278, %v1264
    %v1280 = vadd.f32 %v1279, %v1265
    %v1281 = vadd.f32 %v1280, %v1266
    %v1282 = vadd.f32 %v1281, %v1267
    %v1283 = vadd.f32 %v1282, %v1268
    %v1284 = vadd.f32 %v1283, %v1269
    %v1285 = vadd.f32 %v1284, %v1270
    %v1286 = vadd.f32 %v1285, %v1271
    %v1287 = vadd.f32 %v1286, %v1272
    %v1288 = vadd.f32 %v1287, %v1273
    %v1289 = vadd.f32 %v1288, %v1274
    %v1290 = vrot.slane %v1289, 4
    %v1291 = vadd.f32 %v1289, %v1290
    %v1292 = vrot.slane %v1291, 2
    %v1293 = vadd.f32 %v1291, %v1292
    %v1294 = vrot.slane %v1293, 1
    %v1295 = vadd.f32 %v1293, %v1294
    %s1296 = sld [smem:[#allocation2]]
    %v1297 = vstv %s1296
    %v1298 = vadd.f32 %v1295, %v1297
    %v1299 = vsub.f32 0.0, %v1298
    %v1300 = vmul.f32 %v1299, 1.442695
    %v1301 = vpow.pop %v1300
    %v1302 = vadd.f32 %v1301, 1.0
    %v1303 = vrcp.pop %v1302
    %v1304 = vmul.f32 1.0, %v1303
    %v1305 = vmul.f32 %v1304, 4.0
    %v1306 = vadd.f32 %v1305, 1.0
    %1307 = vst [vmem:[#allocation3] sm:$0x1] %v1306
    // Predicated region
    $region46: #{tpu_custom_call.1} parent=1 // pred_check
      _
    $region47: #{tpu_custom_call.1} parent=1 // pred_check_branch
      %1309 = sbr.rel (0) target = $region49
    $region48: #{tpu_custom_call.1} parent=1 // pred_region
      %s1311 = ssub.s32 16, 16
      %1312 = vsyncadd [#allocation4], %s1311
      %s1314 = sshll.u32 [#allocation3], 4
      %s1315 = int_to_ptr.vmem [resolvable:$true] %s1314
      %1317 = dma.vmem_to_hbm [thread:$0]  %s1315, 16, %s11, [#allocation4]
    $region49: #{tpu_custom_call.1} parent=1 // pred_fallthru
      _
    // Predicated region
    $region50: #{tpu_custom_call.1} parent=1 // pred_check
      _
    $region51: #{tpu_custom_call.1} parent=1 // pred_check_branch
      %1319 = sbr.rel (0) target = $region53
    $region52: #{tpu_custom_call.1} parent=1 // pred_region
      %1320 = dma.done [#allocation4], 16
    $region53: #{tpu_custom_call.1} parent=1 // pred_fallthru
      _
    %1321 = vsyncpa [#allocation4], 1

</llo_original>
